<compile_context>
chip_gen: v7x
topology: tpu7x:2x2x1
jax: 0.10.0
libtpu: 0.0.40
codegen_flags: <defaults>
</compile_context>

<pallas_src>
import jax
import jax.numpy as jnp
from jax.experimental import pallas as pl
from jax.experimental.pallas import tpu as pltpu


_LANE = 512                           # last-dim width: multiple of 128 -> unmasked vst
_MAX_BLOCK_BYTES = 4 * 1024 * 1024    # <= 4 MiB per block buffer (v7x-safe)


def _cdiv(a, b):
    return -(-a // b)


def _round_up(a, b):
    return _cdiv(a, b) * b


# ----------------------------------------------------------------------------
# StepPromptAdapter MLP -> per-layer (scale, shift), in plain JAX (too small for
# a kernel launch: D=32, L=4).
# ----------------------------------------------------------------------------
def step_scale_shift(task_embedding, p):
    e = task_embedding.reshape(-1).astype(jnp.float32)        # squeeze(0)
    h = jnp.maximum(e @ p["w1"].T + p["b1"], 0.0)             # relu(linear1)
    o = h @ p["w2"].T + p["b2"]                               # linear2 -> [2L]
    L = p["multiplier_bias"].shape[0]
    gm, go = o[:L], o[L:]                                     # torch.chunk(out, 2, -1)
    scale = 1.0 + p["multiplier_bias"] * gm                   # [L]
    shift = p["offset_bias"] * go                             # [L]
    return scale, shift


# ----------------------------------------------------------------------------
# Fused affine kernel: one grid step = one (block_rows, 512) tile of the packed
# slab; the prefetched SMEM table gives the tile's layer id, and scale/shift are
# SMEM-resident [1, L] vectors indexed by that id.
# ----------------------------------------------------------------------------
def _fused_affine_kernel(ids_ref, scale_ref, shift_ref, x_ref, o_ref):
    layer = ids_ref[pl.program_id(0)]          # SMEM int32 lookup
    s = scale_ref[0, layer]                    # SMEM scalar loads (resident)
    t = shift_ref[0, layer]
    y = x_ref[...].astype(jnp.float32) * s + t  # native-dtype DMA, f32 math in-register
    o_ref[...] = y.astype(o_ref.dtype)


def _fused_scale_shift_apply(entries, scale, shift):
    """entries: list of (key, layer_index, value) sharing one dtype.
    Returns {key: scale[layer] * value + shift[layer]} in the native dtype."""
    dtype = entries[0][2].dtype
    itemsize = jnp.dtype(dtype).itemsize
    sublane = max(8, 32 // itemsize)           # f32: 8, bf16/fp16: 16, int8/fp8: 32

    sizes = [int(v.size) for _, _, v in entries]
    rows = [max(1, _cdiv(s, _LANE)) for s in sizes]
    total_rows = sum(rows)

    # Block rows: as large as possible (<= 4 MiB per buffer), no larger than the
    # biggest segment needs, and small enough that the grid has ~8+ steps so both
    # v7x TensorCores get work on the "parallel" axis below.
    max_block_rows = max(sublane, _MAX_BLOCK_BYTES // (_LANE * itemsize))
    block_rows = min(max_block_rows,
                     _round_up(max(rows), sublane),
                     max(sublane, _round_up(_cdiv(total_rows, 8), sublane)))

    # Pack all parameters (native dtype) into one lane-dense slab.  Each parameter
    # occupies a whole number of row-blocks so every grid step has a single layer id.
    segs, block_ids, layout = [], [], []
    row_off = 0
    for (key, layer_idx, val), r in zip(entries, rows):
        n_blocks = _cdiv(r, block_rows)
        seg_rows = n_blocks * block_rows
        flat = val.reshape(-1)
        pad = seg_rows * _LANE - flat.size
        if pad:
            flat = jnp.pad(flat, (0, pad))
        segs.append(flat.reshape(seg_rows, _LANE))
        block_ids.extend([layer_idx] * n_blocks)
        layout.append((key, val, row_off, seg_rows))
        row_off += seg_rows
    slab = segs[0] if len(segs) == 1 else jnp.concatenate(segs, axis=0)
    n_grid = len(block_ids)
    ids = jnp.asarray(block_ids, dtype=jnp.int32)

    # TODO(synk): below a few MiB of total slab, a fused XLA `scale*val + shift`
    # beats the custom-call launch; production code should dispatch on slab.size.
    out_slab = pl.pallas_call(
        _fused_affine_kernel,
        out_shape=jax.ShapeDtypeStruct(slab.shape, dtype),
        grid_spec=pltpu.PrefetchScalarGridSpec(
            num_scalar_prefetch=1,                                # block -> layer id table
            grid=(n_grid,),
            in_specs=[
                pl.BlockSpec(memory_space=pltpu.MemorySpace.SMEM),  # scale [1, L]
                pl.BlockSpec(memory_space=pltpu.MemorySpace.SMEM),  # shift [1, L]
                pl.BlockSpec((block_rows, _LANE), lambda i, _ids: (i, 0)),
            ],
            out_specs=pl.BlockSpec((block_rows, _LANE), lambda i, _ids: (i, 0)),
        ),
        compiler_params=pltpu.CompilerParams(
            dimension_semantics=("parallel",),    # v7x: shard row blocks across 2 TCs
            vmem_limit_bytes=32 * 1024 * 1024,    # 4 buffers x <=4 MiB fits every gen
        ),
        # NOTE: input_output_aliases (temp slab -> output slab) would also donate the
        # packed buffer; omitted to stay robust across pallas versions (marginal win).
    )(ids,
      scale.reshape(1, -1).astype(jnp.float32),
      shift.reshape(1, -1).astype(jnp.float32),
      slab)

    updated = {}
    for key, val, off, seg_rows in layout:
        flat = out_slab[off:off + seg_rows].reshape(-1)[:val.size]
        updated[key] = flat.reshape(val.shape)
    return updated


# ----------------------------------------------------------------------------
# PromptAdapter.forward
# ----------------------------------------------------------------------------
def prompt_adapter_forward(adapter_params, task_embedding, num_step,
                           prompt_generator_params):
    """adapter_params: list (one per training step) of StepPromptAdapter params."""
    step_params = adapter_params[num_step]        # ModuleList indexing with a static int
    scale, shift = step_scale_shift(task_embedding, step_params)   # each [L] f32

    # One fused slab / kernel launch per parameter dtype (normally a single group).
    # TODO(synk): torch would promote non-f32 params to f32 here (f32 scalars in the
    # affine); we keep the native dtype per the bandwidth guidance.
    groups = {}
    for i, (key, val) in enumerate(prompt_generator_params.items()):
        groups.setdefault(jnp.dtype(val.dtype), []).append((key, i, val))

    updated = {}
    for entries in groups.values():
        updated.update(_fused_scale_shift_apply(entries, scale, shift))
    return {k: updated[k] for k in prompt_generator_params}       # original order


if __name__ == "__main__":
    input_dim = 32          # D
    num_layers = 4          # num_prompt_generator_layers (L)
    num_steps = 2           # args.number_of_training_steps_per_iter
    num_step = 1

    key = jax.random.PRNGKey(0)
    keys = iter(jax.random.split(key, 32))

    def nrm(shape, s=1.0):
        return jax.random.normal(next(keys), shape, dtype=jnp.float32) * s

    adapter_params = []
    for _ in range(num_steps):
        adapter_params.append(dict(
            w1=nrm((input_dim, input_dim), 0.1),
            b1=nrm((input_dim,), 0.1),
            w2=nrm((2 * num_layers, input_dim), 0.1),
            b2=nrm((2 * num_layers,), 0.1),
            # torch inits these biases to zeros; random here so the demo exercises the math.
            multiplier_bias=nrm((num_layers,)),
            offset_bias=nrm((num_layers,)),
        ))

    task_embedding = nrm((1, input_dim))            # shape before .squeeze(0)

    prompt_generator_params = {
        "layer0.weight": nrm((4, 64, 64)),          # 16384 elems -> multiple row blocks
        "layer1.weight": nrm((8, 32)),
        "layer2.weight": nrm((16, 16)),
        "layer3.weight": nrm((3, 5, 7)),
    }

    out = prompt_adapter_forward(adapter_params, task_embedding, num_step,
                                 prompt_generator_params)
    out = jax.block_until_ready(out)

    # Pure-JAX reference of the torch forward.
    p = adapter_params[num_step]
    e0 = task_embedding[0]
    h = jnp.maximum(e0 @ p["w1"].T + p["b1"], 0.0)
    o2 = h @ p["w2"].T + p["b2"]
    gm, go = o2[:num_layers], o2[num_layers:]
    for i, (k, v) in enumerate(prompt_generator_params.items()):
        ref = (1.0 + p["multiplier_bias"][i] * gm[i]) * v + p["offset_bias"][i] * go[i]
        got = out[k]
        assert got.shape == v.shape and got.dtype == v.dtype, k
        assert jnp.allclose(got, ref, atol=1e-5, rtol=1e-5), f"mismatch on {k}"

    print("KERNEL_OK")
</pallas_src>

<mosaic_0001>
module attributes {stable_mosaic.version = 11 : i64} {
  func.func @_fused_affine_kernel(%arg0: i32, %arg1: memref<7xi32, #tpu.memory_space<smem>>, %arg2: memref<1x4xf32, #tpu.memory_space<smem>>, %arg3: memref<1x4xf32, #tpu.memory_space<smem>>, %arg4: memref<8x512xf32, #tpu.memory_space<vmem>>, %arg5: memref<8x512xf32, #tpu.memory_space<vmem>>) attributes {dimension_semantics = [#tpu.dimension_semantics<parallel>], iteration_bounds = array<i64: 7>, scalar_prefetch = 1 : i64, scratch_operands = 0 : i64, tpu.core_type = #tpu.core_type<tc>, window_params = [{transform_indices = @transform_0, window_bounds = array<i64: 1, 4>}, {transform_indices = @transform_1, window_bounds = array<i64: 1, 4>}, {transform_indices = @transform_2, window_bounds = array<i64: 8, 512>}, {transform_indices = @transform_3, window_bounds = array<i64: 8, 512>}]} {
    %0 = arith.index_cast %arg0 : i32 to index
    %1 = memref.load %arg1[%0] : memref<7xi32, #tpu.memory_space<smem>>
    %c0 = arith.constant 0 : index
    %2 = arith.index_cast %1 : i32 to index
    %3 = memref.load %arg2[%c0, %2] : memref<1x4xf32, #tpu.memory_space<smem>>
    %c0_0 = arith.constant 0 : index
    %4 = arith.index_cast %1 : i32 to index
    %5 = memref.load %arg3[%c0_0, %4] : memref<1x4xf32, #tpu.memory_space<smem>>
    %c0_1 = arith.constant 0 : index
    %c0_2 = arith.constant 0 : index
    %6 = vector.load %arg4[%c0_1, %c0_2] : memref<8x512xf32, #tpu.memory_space<vmem>>, vector<8x512xf32>
    %7 = vector.broadcast %3 : f32 to vector<8x512xf32>
    %8 = arith.mulf %6, %7 : vector<8x512xf32>
    %9 = vector.broadcast %5 : f32 to vector<8x512xf32>
    %10 = arith.addf %8, %9 : vector<8x512xf32>
    %c0_3 = arith.constant 0 : index
    %c0_4 = arith.constant 0 : index
    %11 = vector.load %arg5[%c0_3, %c0_4] : memref<8x512xf32, #tpu.memory_space<vmem>>, vector<8x512xf32>
    tpu.vector_store %arg5[%c0_3, %c0_4], %10 {strides = array<i32>} : memref<8x512xf32, #tpu.memory_space<vmem>>, vector<8x512xf32>,
    return
  }
  func.func @transform_0(%arg0: i32, %arg1: memref<7xi32, #tpu.memory_space<smem>>) -> (i32, i32) {
    %c0_i32 = arith.constant 0 : i32
    %c0_i32_0 = arith.constant 0 : i32
    %c0_i32_1 = arith.constant 0 : i32
    return %c0_i32, %c0_i32_0 : i32, i32
  }
  func.func @transform_1(%arg0: i32, %arg1: memref<7xi32, #tpu.memory_space<smem>>) -> (i32, i32) {
    %c0_i32 = arith.constant 0 : i32
    %c0_i32_0 = arith.constant 0 : i32
    %c0_i32_1 = arith.constant 0 : i32
    return %c0_i32, %c0_i32_0 : i32, i32
  }
  func.func @transform_2(%arg0: i32, %arg1: memref<7xi32, #tpu.memory_space<smem>>) -> (i32, i32) {
    %c0_i32 = arith.constant 0 : i32
    %c0_i32_0 = arith.constant 0 : i32
    return %arg0, %c0_i32 : i32, i32
  }
  func.func @transform_3(%arg0: i32, %arg1: memref<7xi32, #tpu.memory_space<smem>>) -> (i32, i32) {
    %c0_i32 = arith.constant 0 : i32
    %c0_i32_0 = arith.constant 0 : i32
    return %arg0, %c0_i32 : i32, i32
  }
}

</mosaic_0001>

<llo_original>
// kernel: tpu_custom_call.1
$region0: #{tpu_custom_call.1}
  #allocation0 [shape = 'u32[]', space=smem, size = 0x4, offset = 0x4, fixed_abs, tag = 'smem constant byte address 0x4 - core index']
  #allocation1 [shape = 'u32[144,128]{1,0:T(1,128)}', space=vmem, size = 0x12000, scoped, tag = 'internal scratch']
  #allocation2 [shape = 's32[1]{0}', space=sflag, size = 0x4, scoped, tag = 'scoped memory for tpu_custom_call.1']
  #allocation3 [shape = 'u8[512]{0}', space=smem, size = 0x200, scoped, tag = 'prefetched SMEM operand 0']
  %s0 = inlined_call_operand.hbm [shape: s32[7], index: 0, kind: input, shape index: {}]
  %s1 = inlined_call_operand.vmem [shape: f32[1,4], index: 1, kind: input, shape index: {}]
  %s2 = inlined_call_operand.vmem [shape: f32[1,4], index: 2, kind: input, shape index: {}]
  %s3 = inlined_call_operand.hbm [shape: f32[56,512], index: 3, kind: input, shape index: {}]
  %s4 = inlined_call_operand.hbm [shape: f32[56,512], index: 4, kind: output, shape index: {}]
  %s5 = sld [smem:[#allocation0]]
  $region57: #{tpu_custom_call.1} parent=0
    _
  %s7 = ssub.s32 1, %s5
  %s8 = scalar_select 0, %s7, %s5
  %10 = dma.hbm_to_smem %s0, 16, [#allocation3], [#allocation2]
  %11 = dma.done [#allocation2], 16
  %12 = sfence
  $region1: #{tpu_custom_call.1} parent=0
    #allocation4 [shape = 'u8[512]{0}', space=smem, size = 0x200, scoped, tag = 'input window, operand 1, single buffered']
    #allocation5 [shape = 's32[2]{0}', space=sflag, size = 0x8, scoped, tag = 'scoped memory for tpu_custom_call.1']
    #allocation6 [shape = 's32[2]{0}', space=sflag, size = 0x8, scoped, tag = 'scoped memory for tpu_custom_call.1']
    #allocation7 [shape = 's32[2]{0}', space=sflag, size = 0x8, scoped, tag = 'scoped memory for tpu_custom_call.1']
    #allocation8 [shape = 'u8[512]{0}', space=smem, size = 0x200, scoped, tag = 'input window, operand 2, single buffered']
    #allocation9 [shape = 's32[1]{0}', space=sflag, size = 0x4, scoped, tag = 'scoped memory for tpu_custom_call.1']
    #allocation10 [shape = 'u8[32768]{0}', space=vmem, size = 0x8000, scoped, tag = 'input window, operand 3']
    #allocation11 [shape = 'u8[32768]{0}', space=vmem, size = 0x8000, scoped, tag = 'output window, operand 0']
    %13 = vsyncpa [#allocation7], 0
    %14 = vsyncpa [#allocation9], 0
    %15 = vsyncpa [#allocation5], 0
    %s16 = scalar_lea.sflag [#allocation5], 1
    %17 = vsyncpa %s16, 0
    %18 = vsyncpa [#allocation6], 0
    %s19 = scalar_lea.sflag [#allocation6], 1
    %20 = vsyncpa %s19, 0
    loop: start=0, step=1, limit=9
    $region2: #{tpu_custom_call.1} parent=1 // loop_pre_header
      _
    $region3: #{tpu_custom_call.1} parent=1 // loop_header
      %s22 = sphi 0, %s26
      %p23 = scmp.ge.s32.totalorder %s22, 9
      %s30 = sphi 0, %s30
      %s32 = sphi 0, %s30
      %s33 = sphi 0, %s32
      %s47 = sphi 0, %s33
      %s51 = sphi 0, %s51
      %s53 = sphi 0, %s51
      %s54 = sphi 0, %s53
      %s68 = sphi 0, %s54
      %s74 = sphi 0, %s76
      %s77 = sphi 0, %s74
      %s78 = sphi 0, %s77
      %s94 = sphi 0, %s78
      %s100 = sphi 0, %s102
      %s103 = sphi 0, %s100
      %s104 = sphi 0, %s103
      %s120 = sphi 0, %s104
    $region4: #{tpu_custom_call.1} parent=1 // loop_header_branch
      %25 = sbr.rel (%p23) target = $region8
    $region5: #{tpu_custom_call.1} parent=1 // loop_body
      %s27 = ssub.s32 %s22, 1
      %s28 = ssub.s32 %s22, 2
      %s29 = sadd.s32 %s22, 1
      %s31 = sadd.s32 %s30, 1
      %p34 = scmp.eq.s32.totalorder %s22, 6
      %p35 = scmp.ne.s32.totalorder %s30, %s32
      %p36 = scmp.eq.s32.totalorder %s22, 0
      %p37 = por %p35, %p36
      %p38 = scmp.ne.s32.totalorder %s30, %s32
      %p39 = scmp.eq.s32.totalorder %s27, 6
      %p40 = por %p38, %p39
      %p41 = scmp.ne.s32.totalorder %s32, %s33
      %p42 = scmp.eq.s32.totalorder %s27, 0
      %p43 = por %p41, %p42
      %p44 = scmp.ne.s32.totalorder %s32, %s33
      %p45 = scmp.eq.s32.totalorder %s28, 6
      %p46 = por %p44, %p45
      %p48 = scmp.ne.s32.totalorder %s33, %s47
      %p49 = scmp.eq.s32.totalorder %s28, 0
      %p50 = por %p48, %p49
      %s52 = sadd.s32 %s51, 1
      %p55 = scmp.eq.s32.totalorder %s22, 6
      %p56 = scmp.ne.s32.totalorder %s51, %s53
      %p57 = scmp.eq.s32.totalorder %s22, 0
      %p58 = por %p56, %p57
      %p59 = scmp.ne.s32.totalorder %s51, %s53
      %p60 = scmp.eq.s32.totalorder %s27, 6
      %p61 = por %p59, %p60
      %p62 = scmp.ne.s32.totalorder %s53, %s54
      %p63 = scmp.eq.s32.totalorder %s27, 0
      %p64 = por %p62, %p63
      %p65 = scmp.ne.s32.totalorder %s53, %s54
      %p66 = scmp.eq.s32.totalorder %s28, 6
      %p67 = por %p65, %p66
      %p69 = scmp.ne.s32.totalorder %s54, %s68
      %p70 = scmp.eq.s32.totalorder %s28, 0
      %p71 = por %p69, %p70
      %s72 = ssub.s32 %s22, %s29
      %p73 = scmp.eq.s32.totalorder %s72, 0
      %s75 = sadd.s32 %s74, 1
      %s76 = scalar_select %p73, %s74, %s75
      %p79 = pneg %p73
      %p80 = scmp.eq.s32.totalorder %s22, 6
      %p81 = por %p79, %p80
      %p82 = scmp.ne.s32.totalorder %s74, %s77
      %p83 = scmp.eq.s32.totalorder %s22, 0
      %p84 = por %p82, %p83
      %p85 = scmp.ne.s32.totalorder %s74, %s77
      %p86 = scmp.eq.s32.totalorder %s27, 6
      %p87 = por %p85, %p86
      %p88 = scmp.ne.s32.totalorder %s77, %s78
      %p89 = scmp.eq.s32.totalorder %s27, 0
      %p90 = por %p88, %p89
      %p91 = scmp.ne.s32.totalorder %s77, %s78
      %p92 = scmp.eq.s32.totalorder %s28, 6
      %p93 = por %p91, %p92
      %p95 = scmp.ne.s32.totalorder %s78, %s94
      %p96 = scmp.eq.s32.totalorder %s28, 0
      %p97 = por %p95, %p96
      %s98 = ssub.s32 %s22, %s29
      %p99 = scmp.eq.s32.totalorder %s98, 0
      %s101 = sadd.s32 %s100, 1
      %s102 = scalar_select %p99, %s100, %s101
      %p105 = pneg %p99
      %p106 = scmp.eq.s32.totalorder %s22, 6
      %p107 = por %p105, %p106
      %p108 = scmp.ne.s32.totalorder %s100, %s103
      %p109 = scmp.eq.s32.totalorder %s22, 0
      %p110 = por %p108, %p109
      %p111 = scmp.ne.s32.totalorder %s100, %s103
      %p112 = scmp.eq.s32.totalorder %s27, 6
      %p113 = por %p111, %p112
      %p114 = scmp.ne.s32.totalorder %s103, %s104
      %p115 = scmp.eq.s32.totalorder %s27, 0
      %p116 = por %p114, %p115
      %p117 = scmp.ne.s32.totalorder %s103, %s104
      %p118 = scmp.eq.s32.totalorder %s28, 6
      %p119 = por %p117, %p118
      %p121 = scmp.ne.s32.totalorder %s104, %s120
      %p122 = scmp.eq.s32.totalorder %s28, 0
      %p123 = por %p121, %p122
      %p124 = scmp.le.s32.totalorder 1, %s22
      %p125 = scmp.lt.s32.totalorder %s22, 8
      %p126 = pnand %p124, %p125
      %p127 = pneg %p126
      // Predicated region
      $region9: #{tpu_custom_call.1} parent=5 // pred_check
        _
      $region10: #{tpu_custom_call.1} parent=5 // pred_check_branch
        %129 = sbr.rel (%p126) target = $region12
      $region11: #{tpu_custom_call.1} parent=5 // pred_region
        %s130 = ssub.s32 %s22, 1
        // Predicated region
        $region13: #{tpu_custom_call.1} parent=11 // pred_check
          %p131 = pneg %p43
        $region14: #{tpu_custom_call.1} parent=11 // pred_check_branch
          %133 = sbr.rel (%p131) target = $region16
        $region15: #{tpu_custom_call.1} parent=11 // pred_region
          %s135 = ssub.s32 16, 16
          %136 = vsyncadd [#allocation7], %s135
          %s138 = sshll.u32 %s1, 4
          %s139 = int_to_ptr.vmem [resolvable:$true] %s138
          %141 = dma.vmem_to_smem %s139, 16, [#allocation4], [#allocation7]
        $region16: #{tpu_custom_call.1} parent=11 // pred_fallthru
          _
        // Predicated region
        $region17: #{tpu_custom_call.1} parent=11 // pred_check
          %p142 = pneg %p64
        $region18: #{tpu_custom_call.1} parent=11 // pred_check_branch
          %144 = sbr.rel (%p142) target = $region20
        $region19: #{tpu_custom_call.1} parent=11 // pred_region
          %s146 = ssub.s32 16, 16
          %147 = vsyncadd [#allocation9], %s146
          %s149 = sshll.u32 %s2, 4
          %s150 = int_to_ptr.vmem [resolvable:$true] %s149
          %152 = dma.vmem_to_smem %s150, 16, [#allocation8], [#allocation9]
        $region20: #{tpu_custom_call.1} parent=11 // pred_fallthru
          _
      $region12: #{tpu_custom_call.1} parent=5 // pred_fallthru
        _
      %p153 = scmp.lt.s32.totalorder %s22, 7
      // Predicated region
      $region21: #{tpu_custom_call.1} parent=5 // pred_check
        %p154 = pneg %p153
      $region22: #{tpu_custom_call.1} parent=5 // pred_check_branch
        %156 = sbr.rel (%p154) target = $region24
      $region23: #{tpu_custom_call.1} parent=5 // pred_region
        // Predicated region
        $region25: #{tpu_custom_call.1} parent=23 // pred_check
          %p157 = pneg %p84
        $region26: #{tpu_custom_call.1} parent=23 // pred_check_branch
          %159 = sbr.rel (%p157) target = $region28
        $region27: #{tpu_custom_call.1} parent=23 // pred_region
          %s160 = sand.u32 %s74, 1
          %s161 = scalar_lea.sflag [#allocation5], %s160
          %s162 = sand.u32 %s74, 1
          %s163 = smul.addr %s162, 32
          %s164 = scalar_lea.vmem [#allocation10], %s163
          %s166 = ssub.s32 512, 512
          %167 = vsyncadd %s161, %s166
          %s168 = smul.addr %s22, 4
          %s169 = smul.addr %s168, 128
          %s170 = scalar_lea.hbm %s3, %s169
          %s172 = sshll.u32 %s164, 4
          %s173 = int_to_ptr.vmem [resolvable:$true] %s172
          %175 = dma.hbm_to_vmem [thread:$0]  %s170, 512, %s173, %s161
        $region28: #{tpu_custom_call.1} parent=23 // pred_fallthru
          _
      $region24: #{tpu_custom_call.1} parent=5 // pred_fallthru
        _
      %p176 = scmp.le.s32.totalorder 1, %s22
      %p177 = scmp.lt.s32.totalorder %s22, 8
      %p178 = pnand %p176, %p177
      %p179 = pneg %p178
      // Predicated region
      $region29: #{tpu_custom_call.1} parent=5 // pred_check
        _
      $region30: #{tpu_custom_call.1} parent=5 // pred_check_branch
        %181 = sbr.rel (%p178) target = $region32
      $region31: #{tpu_custom_call.1} parent=5 // pred_region
        %s182 = ssub.s32 %s22, 1
        // Predicated region
        $region33: #{tpu_custom_call.1} parent=31 // pred_check
          %p183 = pneg %p43
        $region34: #{tpu_custom_call.1} parent=31 // pred_check_branch
          %185 = sbr.rel (%p183) target = $region36
        $region35: #{tpu_custom_call.1} parent=31 // pred_region
          %186 = dma.done [#allocation7], 16
        $region36: #{tpu_custom_call.1} parent=31 // pred_fallthru
          _
        // Predicated region
        $region37: #{tpu_custom_call.1} parent=31 // pred_check
          %p187 = pneg %p64
        $region38: #{tpu_custom_call.1} parent=31 // pred_check_branch
          %189 = sbr.rel (%p187) target = $region40
        $region39: #{tpu_custom_call.1} parent=31 // pred_region
          %190 = dma.done [#allocation9], 16
        $region40: #{tpu_custom_call.1} parent=31 // pred_fallthru
          _
        %s191 = sand.u32 %s77, 1
        %s192 = scalar_lea.sflag [#allocation5], %s191
        %s193 = sand.u32 %s77, 1
        %s194 = smul.addr %s193, 32
        %s195 = scalar_lea.vmem [#allocation10], %s194
        // Predicated region
        $region41: #{tpu_custom_call.1} parent=31 // pred_check
          %p196 = pneg %p90
        $region42: #{tpu_custom_call.1} parent=31 // pred_check_branch
          %198 = sbr.rel (%p196) target = $region44
        $region43: #{tpu_custom_call.1} parent=31 // pred_region
          %199 = dma.done %s192, 512
        $region44: #{tpu_custom_call.1} parent=31 // pred_fallthru
          _
        %200 = sfence
        %p201 = pneg %p43
        %p202 = pneg %p40
        %p203 = pneg %p64
        %p204 = pneg %p61
        %s205 = sand.u32 %s77, 1
        %s206 = scalar_lea.sflag [#allocation5], %s205
        %s207 = sand.u32 %s77, 1
        %s208 = smul.addr %s207, 32
        %s209 = scalar_lea.vmem [#allocation10], %s208
        %p210 = pneg %p90
        %p211 = pneg %p87
        %p212 = pneg %p116
        %p213 = pneg %p113
        %s214 = sand.u32 %s103, 1
        %s215 = scalar_lea.sflag [#allocation6], %s214
        %s216 = sand.u32 %s103, 1
        %s217 = smul.addr %s216, 32
        %s218 = scalar_lea.vmem [#allocation11], %s217
        %s219 = sld [smem:[#allocation3 + %s27]]
        %s220 = sld [smem:[#allocation4 + %s219]]
        %s221 = sld [smem:[#allocation8 + %s219]]
        %v222 = vld [vmem:[%s195] sm:$0xff]
        %v223 = vld [vmem:[%s195 + $0x8] sm:$0xff]
        %v224 = vld [vmem:[%s195 + $0x10] sm:$0xff]
        %v225 = vld [vmem:[%s195 + $0x18] sm:$0xff]
        %v226 = vstv %s220
        %v227 = vmul.f32 %v222, %v226
        %v228 = vmul.f32 %v223, %v226
        %v229 = vmul.f32 %v224, %v226
        %v230 = vmul.f32 %v225, %v226
        %v231 = vstv %s221
        %v232 = vadd.f32 %v227, %v231
        %v233 = vadd.f32 %v228, %v231
        %v234 = vadd.f32 %v229, %v231
        %v235 = vadd.f32 %v230, %v231
        %236 = vst [vmem:[%s218] sm:$0xff] %v232
        %237 = vst [vmem:[%s218 + $0x8] sm:$0xff] %v233
        %238 = vst [vmem:[%s218 + $0x10] sm:$0xff] %v234
        %239 = vst [vmem:[%s218 + $0x18] sm:$0xff] %v235
        %s240 = sand.u32 %s103, 1
        %s241 = scalar_lea.sflag [#allocation6], %s240
        %s242 = sand.u32 %s103, 1
        %s243 = smul.addr %s242, 32
        %s244 = scalar_lea.vmem [#allocation11], %s243
        // Predicated region
        $region45: #{tpu_custom_call.1} parent=31 // pred_check
          %p245 = pneg %p113
        $region46: #{tpu_custom_call.1} parent=31 // pred_check_branch
          %247 = sbr.rel (%p245) target = $region48
        $region47: #{tpu_custom_call.1} parent=31 // pred_region
          %s249 = ssub.s32 512, 512
          %250 = vsyncadd %s241, %s249
          %s251 = smul.addr %s27, 4
          %s252 = smul.addr %s251, 128
          %s253 = scalar_lea.hbm %s4, %s252
          %s255 = sshll.u32 %s244, 4
          %s256 = int_to_ptr.vmem [resolvable:$true] %s255
          %258 = dma.vmem_to_hbm [thread:$0]  %s256, 512, %s253, %s241
        $region48: #{tpu_custom_call.1} parent=31 // pred_fallthru
          _
      $region32: #{tpu_custom_call.1} parent=5 // pred_fallthru
        _
      %p259 = scmp.le.s32.totalorder 2, %s22
      // Predicated region
      $region49: #{tpu_custom_call.1} parent=5 // pred_check
        %p260 = pneg %p259
      $region50: #{tpu_custom_call.1} parent=5 // pred_check_branch
        %262 = sbr.rel (%p260) target = $region52
      $region51: #{tpu_custom_call.1} parent=5 // pred_region
        %s263 = ssub.s32 %s22, 2
        // Predicated region
        $region53: #{tpu_custom_call.1} parent=51 // pred_check
          %p264 = pneg %p119
        $region54: #{tpu_custom_call.1} parent=51 // pred_check_branch
          %266 = sbr.rel (%p264) target = $region56
        $region55: #{tpu_custom_call.1} parent=51 // pred_region
          %s267 = sand.u32 %s104, 1
          %s268 = scalar_lea.sflag [#allocation6], %s267
          %s269 = sand.u32 %s104, 1
          %s270 = smul.addr %s269, 32
          %s271 = scalar_lea.vmem [#allocation11], %s270
          %272 = dma.done %s268, 512
        $region56: #{tpu_custom_call.1} parent=51 // pred_fallthru
          _
      $region52: #{tpu_custom_call.1} parent=5 // pred_fallthru
        _
    $region6: #{tpu_custom_call.1} parent=1 // loop_footer
      %s26 = sadd.s32 1, %s22
    $region7: #{tpu_custom_call.1} parent=1 // loop_footer_branch
      %21 = sbr.rel target = $region3
    $region8: #{tpu_custom_call.1} parent=1 // loop_exit
      _
    %273 = vsyncpa [#allocation5], 1
    %s274 = scalar_lea.sflag [#allocation5], 1
    %275 = vsyncpa %s274, 1
    %276 = vsyncpa [#allocation6], 1
    %s277 = scalar_lea.sflag [#allocation6], 1
    %278 = vsyncpa %s277, 1
    %279 = vsyncpa [#allocation7], 1
    %s280 = scalar_lea.sflag [#allocation7], 1
    %281 = vsyncpa %s280, 1
    %282 = vsyncpa [#allocation9], 1

</llo_original>
